<compile_context>
chip_gen: v6e
topology: v6e:2x2x1
jax: 0.10.0
libtpu: 0.0.40
codegen_flags: <defaults>
</compile_context>

<pallas_src>
import functools

import jax
import jax.numpy as jnp
from jax.experimental import pallas as pl
from jax.experimental.pallas import tpu as pltpu


# ----------------------------------------------------------------------------
# Small helpers: integer mod/div that lower to bit ops when n is a power of two
# ----------------------------------------------------------------------------
def _mod(a, n):
    if n & (n - 1) == 0:
        return a & (n - 1)
    return a % n


def _div(a, n):
    if n & (n - 1) == 0:
        return a >> (n.bit_length() - 1)
    return a // n


# ----------------------------------------------------------------------------
# Fused kernel: channel shuffle + [1x1 conv+BN+ReLU] -> [KxK dw conv+BN]
#               -> [1x1 conv+BN+ReLU] + concat, one image per grid step.
# Activations are (channels, L) with L = H*W on the lane axis (lane-dense).
# BN scales are pre-folded into w1/wd/w2; b1/bd/b2 are the remaining shifts.
# ----------------------------------------------------------------------------
def _shuffle_block_kernel(x_ref, psel_ref, w1_ref, b1_ref, wd_ref, bd_ref,
                          w2_ref, b2_ref, o_ref, *, H, W, K):
    L = x_ref.shape[-1]          # H * W (whole image per block)
    P = K // 2

    x = x_ref[...]                                                        # (C_in, L)

    # ---- proj half of the channel shuffle (identity on even input channels) ------
    proj = jnp.dot(psel_ref[...], x, preferred_element_type=jnp.float32)  # (CH, L)

    # ---- pointwise conv 1 (shuffle folded into zero-interleaved w1) + bias + ReLU -
    y = jnp.dot(w1_ref[...], x, preferred_element_type=jnp.float32)       # (MID, L)
    y = jnp.maximum(y + b1_ref[...], 0.0)

    # ---- KxK depthwise conv, stride 1, pad P --------------------------------------
    # Lane rotations on the flattened H*W axis + precomputed border masks.  Only
    # valid because each block holds exactly whole image(s) on its flattened axis.
    pos = jax.lax.broadcasted_iota(jnp.int32, (1, L), 1)
    col = _mod(pos, W)
    row = _mod(_div(pos, W), H)
    row_ok = {dr: (row + dr >= 0) & (row + dr < H)
              for dr in range(-P, P + 1) if dr != 0}
    col_ok = {dc: (col + dc >= 0) & (col + dc < W)
              for dc in range(-P, P + 1) if dc != 0}

    acc = y * wd_ref[P * K + P]                       # center-tap init, (MID, L)
    for i in range(K):
        dr = i - P
        for j in range(K):
            dc = j - P
            if dr == 0 and dc == 0:
                continue
            delta = dr * W + dc
            shifted = pltpu.roll(y, (-delta) % L, axis=1)   # shifted[p] = y[p + delta]
            if dr == 0:
                valid = col_ok[dc]
            elif dc == 0:
                valid = row_ok[dr]
            else:
                valid = row_ok[dr] & col_ok[dc]
            acc = acc + jnp.where(valid, shifted, 0.0) * wd_ref[i * K + j]
    y2 = acc + bd_ref[...]

    # ---- pointwise conv 2 (MID -> OUP) + bias + ReLU -------------------------------
    z = jnp.dot(w2_ref[...], y2, preferred_element_type=jnp.float32)      # (OUP, L)
    main = jnp.maximum(z + b2_ref[...], 0.0)

    # ---- fused concat: [proj ; main] in one full, unmasked store --------------------
    o_ref[...] = jnp.concatenate([proj, main], axis=0)                    # (C_out, L)


# ----------------------------------------------------------------------------
# Wrapper: fold BN into weights, fold the shuffle into w1, grid over batch
# ----------------------------------------------------------------------------
def fold_params(p, in_channels):
    MID, K, _ = p["wd"].shape
    # Zero-interleave w1: main branch consumes odd input channels of the full C_in.
    w1_full = jnp.zeros((MID, in_channels), jnp.float32).at[:, 1::2].set(p["w1"] * p["s1"])
    # One-hot selection of even channels (proj half of the shuffle).
    psel = jnp.eye(in_channels, dtype=jnp.float32)[0::2]                  # (CH, C_in)
    wd = (p["wd"] * p["sd"][:, :, None]).reshape(MID, K * K)
    wd = jnp.transpose(wd).reshape(K * K, MID, 1)                         # (K*K, MID, 1)
    return dict(psel=psel, w1=w1_full, b1=p["b1"], wd=wd, bd=p["bd"],
                w2=p["w2"] * p["s2"], b2=p["b2"])


def shufflenet_block_forward(x, params, kernel_size):
    # stride == 1 path only.
    N, C_in, H, W = x.shape
    CH = C_in // 2
    K = kernel_size
    L = H * W
    fp = fold_params(params, C_in)
    MID = fp["w1"].shape[0]
    OUP = fp["w2"].shape[0]
    C_out = CH + OUP

    x_flat = x.reshape(N, C_in, L)            # free reshape (NCHW is contiguous)

    kern = functools.partial(_shuffle_block_kernel, H=H, W=W, K=K)
    out_flat = pl.pallas_call(
        kern,
        out_shape=jax.ShapeDtypeStruct((N, C_out, L), jnp.float32),
        grid=(N,),
        in_specs=[
            pl.BlockSpec((None, C_in, L), lambda n: (n, 0, 0)),   # one image / step
            pl.BlockSpec((CH, C_in), lambda n: (0, 0)),
            pl.BlockSpec((MID, C_in), lambda n: (0, 0)),
            pl.BlockSpec((MID, 1), lambda n: (0, 0)),
            pl.BlockSpec((K * K, MID, 1), lambda n: (0, 0, 0)),
            pl.BlockSpec((MID, 1), lambda n: (0, 0)),
            pl.BlockSpec((OUP, MID), lambda n: (0, 0)),
            pl.BlockSpec((OUP, 1), lambda n: (0, 0)),
        ],
        out_specs=pl.BlockSpec((None, C_out, L), lambda n: (n, 0, 0)),
        compiler_params=pltpu.CompilerParams(
            dimension_semantics=("parallel",),   # v7x: shard images across both TCs
        ),
    )(x_flat, fp["psel"], fp["w1"], fp["b1"], fp["wd"], fp["bd"], fp["w2"], fp["b2"])

    return out_flat.reshape(N, C_out, H, W)


# ----------------------------------------------------------------------------
# Deterministic parameter construction (inference-mode BN folded to scale/shift)
# ----------------------------------------------------------------------------
def make_params(key, channels, mid_channels, oup_main, kernel_size, eps=1e-5):
    ks = jax.random.split(key, 15)

    def bn_fold(kg, kb, km, kv, c):
        gamma = 1.0 + 0.1 * jax.random.normal(kg, (c,), jnp.float32)
        beta = 0.1 * jax.random.normal(kb, (c,), jnp.float32)
        mean = 0.1 * jax.random.normal(km, (c,), jnp.float32)
        var = 1.0 + 0.1 * jnp.abs(jax.random.normal(kv, (c,), jnp.float32))
        scale = gamma / jnp.sqrt(var + eps)
        shift = beta - mean * scale
        return scale.reshape(c, 1), shift.reshape(c, 1)

    w1 = 0.1 * jax.random.normal(ks[0], (mid_channels, channels), jnp.float32)
    wd = 0.1 * jax.random.normal(ks[1], (mid_channels, kernel_size, kernel_size), jnp.float32)
    w2 = 0.1 * jax.random.normal(ks[2], (oup_main, mid_channels), jnp.float32)
    s1, b1 = bn_fold(ks[3], ks[4], ks[5], ks[6], mid_channels)
    sd, bd = bn_fold(ks[7], ks[8], ks[9], ks[10], mid_channels)
    s2, b2 = bn_fold(ks[11], ks[12], ks[13], ks[14], oup_main)
    return dict(w1=w1, s1=s1, b1=b1, wd=wd, sd=sd, bd=bd, w2=w2, s2=s2, b2=b2)


# ----------------------------------------------------------------------------
# Pure-JAX reference for correctness check (faithful to the PyTorch module)
# ----------------------------------------------------------------------------
def channel_shuffle_ref(x):
    bs, c, h, w = x.shape
    x = x.reshape(bs * c // 2, 2, h * w)
    x = jnp.transpose(x, (1, 0, 2))
    x = x.reshape(2, bs, c // 2, h, w)
    return x[0], x[1]


def ref_branch_main(x, p, kernel_size):
    N, C, H, W = x.shape
    K = kernel_size
    P = K // 2
    y = jnp.einsum("mc,nchw->nmhw", p["w1"], x)
    y = y * p["s1"].reshape(1, -1, 1, 1) + p["b1"].reshape(1, -1, 1, 1)
    y = jnp.maximum(y, 0.0)
    yp = jnp.pad(y, ((0, 0), (0, 0), (P, P), (P, P)))
    acc = jnp.zeros_like(y)
    for i in range(K):
        for j in range(K):
            acc = acc + yp[:, :, i:i + H, j:j + W] * p["wd"][None, :, i, j, None, None]
    y2 = acc * p["sd"].reshape(1, -1, 1, 1) + p["bd"].reshape(1, -1, 1, 1)
    z = jnp.einsum("om,nmhw->nohw", p["w2"], y2)
    z = z * p["s2"].reshape(1, -1, 1, 1) + p["b2"].reshape(1, -1, 1, 1)
    return jnp.maximum(z, 0.0)


def ref_forward(x, p, kernel_size):
    x_proj, x_main = channel_shuffle_ref(x)
    return jnp.concatenate([x_proj, ref_branch_main(x_main, p, kernel_size)], axis=1)


if __name__ == "__main__":
    # Module config: ShuffleNetBlock(in_channels=8, out_channels=8, mid_channels=8,
    #                                kernel_size=3, stride=1, sequence='pdp', affine=True)
    in_channels, out_channels, mid_channels = 8, 8, 8
    kernel_size, stride = 3, 1
    channels = in_channels // 2            # 4
    oup_main = out_channels - channels     # 4
    N, H, W = 2, 16, 16

    key = jax.random.PRNGKey(0)
    kx, kp = jax.random.split(key)
    x = jax.random.normal(kx, (N, in_channels, H, W), jnp.float32)
    params = make_params(kp, channels, mid_channels, oup_main, kernel_size)

    fwd = jax.jit(functools.partial(shufflenet_block_forward, kernel_size=kernel_size))
    out = jax.block_until_ready(fwd(x, params))

    ref = jax.block_until_ready(ref_forward(x, params, kernel_size))
    assert out.shape == (N, out_channels, H, W), out.shape
    max_err = float(jnp.max(jnp.abs(out - ref)))
    assert jnp.allclose(out, ref, atol=2e-3, rtol=2e-3), max_err

    print("KERNEL_OK")
</pallas_src>

<mosaic_0001>
module attributes {stable_mosaic.version = 11 : i64} {
  func.func @_shuffle_block_kernel(%arg0: i32, %arg1: memref<1x8x256xf32, #tpu.memory_space<vmem>>, %arg2: memref<4x8xf32, #tpu.memory_space<vmem>>, %arg3: memref<8x8xf32, #tpu.memory_space<vmem>>, %arg4: memref<8x1xf32, #tpu.memory_space<vmem>>, %arg5: memref<9x8x1xf32, #tpu.memory_space<vmem>>, %arg6: memref<8x1xf32, #tpu.memory_space<vmem>>, %arg7: memref<4x8xf32, #tpu.memory_space<vmem>>, %arg8: memref<4x1xf32, #tpu.memory_space<vmem>>, %arg9: memref<1x8x256xf32, #tpu.memory_space<vmem>>) attributes {dimension_semantics = [#tpu.dimension_semantics<parallel>], iteration_bounds = array<i64: 2>, scalar_prefetch = 0 : i64, scratch_operands = 0 : i64, tpu.core_type = #tpu.core_type<tc>, window_params = [{transform_indices = @transform_0, window_bounds = array<i64: 1, 8, 256>}, {pipeline_mode = #tpu.pipeline_mode<synchronous>, transform_indices = @transform_1, window_bounds = array<i64: 4, 8>}, {pipeline_mode = #tpu.pipeline_mode<synchronous>, transform_indices = @transform_2, window_bounds = array<i64: 8, 8>}, {pipeline_mode = #tpu.pipeline_mode<synchronous>, transform_indices = @transform_3, window_bounds = array<i64: 8, 1>}, {pipeline_mode = #tpu.pipeline_mode<synchronous>, transform_indices = @transform_4, window_bounds = array<i64: 9, 8, 1>}, {pipeline_mode = #tpu.pipeline_mode<synchronous>, transform_indices = @transform_5, window_bounds = array<i64: 8, 1>}, {pipeline_mode = #tpu.pipeline_mode<synchronous>, transform_indices = @transform_6, window_bounds = array<i64: 4, 8>}, {pipeline_mode = #tpu.pipeline_mode<synchronous>, transform_indices = @transform_7, window_bounds = array<i64: 4, 1>}, {transform_indices = @transform_8, window_bounds = array<i64: 1, 8, 256>}]} {
    %c0 = arith.constant 0 : index
    %c0_0 = arith.constant 0 : index
    %c0_1 = arith.constant 0 : index
    %0 = vector.load %arg1[%c0, %c0_0, %c0_1] : memref<1x8x256xf32, #tpu.memory_space<vmem>>, vector<1x8x256xf32>
    %1 = vector.shape_cast %0 : vector<1x8x256xf32> to vector<8x256xf32>
    %c0_2 = arith.constant 0 : index
    %c0_3 = arith.constant 0 : index
    %2 = vector.load %arg2[%c0_2, %c0_3] : memref<4x8xf32, #tpu.memory_space<vmem>>, vector<4x8xf32>
    %cst = arith.constant dense<0.000000e+00> : vector<4x256xf32>
    %3 = tpu.matmul %2, %1, %cst {dimension_numbers = #tpu.dot_dimension_numbers<[1], [0], [0], [1], [0, 0, 1, 1], [], []>} : vector<4x8xf32>, vector<8x256xf32>, vector<4x256xf32> -> vector<4x256xf32>
    %c0_4 = arith.constant 0 : index
    %c0_5 = arith.constant 0 : index
    %4 = vector.load %arg3[%c0_4, %c0_5] : memref<8x8xf32, #tpu.memory_space<vmem>>, vector<8x8xf32>
    %cst_6 = arith.constant dense<0.000000e+00> : vector<8x256xf32>
    %5 = tpu.matmul %4, %1, %cst_6 {dimension_numbers = #tpu.dot_dimension_numbers<[1], [0], [0], [1], [0, 0, 1, 1], [], []>} : vector<8x8xf32>, vector<8x256xf32>, vector<8x256xf32> -> vector<8x256xf32>
    %c0_7 = arith.constant 0 : index
    %c0_8 = arith.constant 0 : index
    %6 = vector.load %arg4[%c0_7, %c0_8] : memref<8x1xf32, #tpu.memory_space<vmem>>, vector<8x1xf32>
    %7 = vector.broadcast %6 : vector<8x1xf32> to vector<8x256xf32>
    %8 = arith.addf %5, %7 : vector<8x256xf32>
    %cst_9 = arith.constant 0.000000e+00 : f32
    %9 = vector.broadcast %cst_9 : f32 to vector<8x256xf32>
    %10 = arith.maximumf %8, %9 : vector<8x256xf32>
    %11 = tpu.iota {dimensions = array<i32: 1>} : vector<1x256xi32>
    %c15_i32 = arith.constant 15 : i32
    %12 = vector.broadcast %c15_i32 : i32 to vector<1x256xi32>
    %13 = arith.andi %11, %12 : vector<1x256xi32>
    %c4_i32 = arith.constant 4 : i32
    %14 = vector.broadcast %c4_i32 : i32 to vector<1x256xi32>
    %15 = arith.shrsi %11, %14 : vector<1x256xi32>
    %c15_i32_10 = arith.constant 15 : i32
    %16 = vector.broadcast %c15_i32_10 : i32 to vector<1x256xi32>
    %17 = arith.andi %15, %16 : vector<1x256xi32>
    %c-1_i32 = arith.constant -1 : i32
    %18 = vector.broadcast %c-1_i32 : i32 to vector<1x256xi32>
    %19 = arith.addi %17, %18 : vector<1x256xi32>
    %c0_i32 = arith.constant 0 : i32
    %20 = vector.broadcast %c0_i32 : i32 to vector<1x256xi32>
    %21 = arith.cmpi sge, %19, %20 : vector<1x256xi32>
    %c-1_i32_11 = arith.constant -1 : i32
    %22 = vector.broadcast %c-1_i32_11 : i32 to vector<1x256xi32>
    %23 = arith.addi %17, %22 : vector<1x256xi32>
    %c16_i32 = arith.constant 16 : i32
    %24 = vector.broadcast %c16_i32 : i32 to vector<1x256xi32>
    %25 = arith.cmpi slt, %23, %24 : vector<1x256xi32>
    %26 = arith.andi %21, %25 : vector<1x256xi1>
    %c1_i32 = arith.constant 1 : i32
    %27 = vector.broadcast %c1_i32 : i32 to vector<1x256xi32>
    %28 = arith.addi %17, %27 : vector<1x256xi32>
    %c0_i32_12 = arith.constant 0 : i32
    %29 = vector.broadcast %c0_i32_12 : i32 to vector<1x256xi32>
    %30 = arith.cmpi sge, %28, %29 : vector<1x256xi32>
    %c1_i32_13 = arith.constant 1 : i32
    %31 = vector.broadcast %c1_i32_13 : i32 to vector<1x256xi32>
    %32 = arith.addi %17, %31 : vector<1x256xi32>
    %c16_i32_14 = arith.constant 16 : i32
    %33 = vector.broadcast %c16_i32_14 : i32 to vector<1x256xi32>
    %34 = arith.cmpi slt, %32, %33 : vector<1x256xi32>
    %35 = arith.andi %30, %34 : vector<1x256xi1>
    %c-1_i32_15 = arith.constant -1 : i32
    %36 = vector.broadcast %c-1_i32_15 : i32 to vector<1x256xi32>
    %37 = arith.addi %13, %36 : vector<1x256xi32>
    %c0_i32_16 = arith.constant 0 : i32
    %38 = vector.broadcast %c0_i32_16 : i32 to vector<1x256xi32>
    %39 = arith.cmpi sge, %37, %38 : vector<1x256xi32>
    %c-1_i32_17 = arith.constant -1 : i32
    %40 = vector.broadcast %c-1_i32_17 : i32 to vector<1x256xi32>
    %41 = arith.addi %13, %40 : vector<1x256xi32>
    %c16_i32_18 = arith.constant 16 : i32
    %42 = vector.broadcast %c16_i32_18 : i32 to vector<1x256xi32>
    %43 = arith.cmpi slt, %41, %42 : vector<1x256xi32>
    %44 = arith.andi %39, %43 : vector<1x256xi1>
    %c1_i32_19 = arith.constant 1 : i32
    %45 = vector.broadcast %c1_i32_19 : i32 to vector<1x256xi32>
    %46 = arith.addi %13, %45 : vector<1x256xi32>
    %c0_i32_20 = arith.constant 0 : i32
    %47 = vector.broadcast %c0_i32_20 : i32 to vector<1x256xi32>
    %48 = arith.cmpi sge, %46, %47 : vector<1x256xi32>
    %c1_i32_21 = arith.constant 1 : i32
    %49 = vector.broadcast %c1_i32_21 : i32 to vector<1x256xi32>
    %50 = arith.addi %13, %49 : vector<1x256xi32>
    %c16_i32_22 = arith.constant 16 : i32
    %51 = vector.broadcast %c16_i32_22 : i32 to vector<1x256xi32>
    %52 = arith.cmpi slt, %50, %51 : vector<1x256xi32>
    %53 = arith.andi %48, %52 : vector<1x256xi1>
    %c4 = arith.constant 4 : index
    %c0_23 = arith.constant 0 : index
    %c0_24 = arith.constant 0 : index
    %54 = vector.load %arg5[%c4, %c0_23, %c0_24] : memref<9x8x1xf32, #tpu.memory_space<vmem>>, vector<1x8x1xf32>
    %55 = vector.shape_cast %54 : vector<1x8x1xf32> to vector<8x1xf32>
    %56 = vector.broadcast %55 : vector<8x1xf32> to vector<8x256xf32>
    %57 = arith.mulf %10, %56 : vector<8x256xf32>
    %c17_i32 = arith.constant 17 : i32
    %58 = tpu.dynamic_rotate %10 by %c17_i32 dim 1 : vector<8x256xf32>, i32 -> vector<8x256xf32>
    %59 = arith.andi %26, %44 : vector<1x256xi1>
    %cst_25 = arith.constant 0.000000e+00 : f32
    %60 = vector.shape_cast %59 : vector<1x256xi1> to vector<1x256xi1>
    %61 = vector.broadcast %60 : vector<1x256xi1> to vector<8x256xi1>
    %62 = vector.broadcast %cst_25 : f32 to vector<8x256xf32>
    %63 = arith.select %61, %58, %62 : vector<8x256xi1>, vector<8x256xf32>
    %c0_26 = arith.constant 0 : index
    %c0_27 = arith.constant 0 : index
    %c0_28 = arith.constant 0 : index
    %64 = vector.load %arg5[%c0_26, %c0_27, %c0_28] : memref<9x8x1xf32, #tpu.memory_space<vmem>>, vector<1x8x1xf32>
    %65 = vector.shape_cast %64 : vector<1x8x1xf32> to vector<8x1xf32>
    %66 = vector.broadcast %65 : vector<8x1xf32> to vector<8x256xf32>
    %67 = arith.mulf %63, %66 : vector<8x256xf32>
    %68 = arith.addf %57, %67 : vector<8x256xf32>
    %c16_i32_29 = arith.constant 16 : i32
    %69 = tpu.dynamic_rotate %10 by %c16_i32_29 dim 1 : vector<8x256xf32>, i32 -> vector<8x256xf32>
    %cst_30 = arith.constant 0.000000e+00 : f32
    %70 = vector.shape_cast %26 : vector<1x256xi1> to vector<1x256xi1>
    %71 = vector.broadcast %70 : vector<1x256xi1> to vector<8x256xi1>
    %72 = vector.broadcast %cst_30 : f32 to vector<8x256xf32>
    %73 = arith.select %71, %69, %72 : vector<8x256xi1>, vector<8x256xf32>
    %c1 = arith.constant 1 : index
    %c0_31 = arith.constant 0 : index
    %c0_32 = arith.constant 0 : index
    %74 = vector.load %arg5[%c1, %c0_31, %c0_32] : memref<9x8x1xf32, #tpu.memory_space<vmem>>, vector<1x8x1xf32>
    %75 = vector.shape_cast %74 : vector<1x8x1xf32> to vector<8x1xf32>
    %76 = vector.broadcast %75 : vector<8x1xf32> to vector<8x256xf32>
    %77 = arith.mulf %73, %76 : vector<8x256xf32>
    %78 = arith.addf %68, %77 : vector<8x256xf32>
    %c15_i32_33 = arith.constant 15 : i32
    %79 = tpu.dynamic_rotate %10 by %c15_i32_33 dim 1 : vector<8x256xf32>, i32 -> vector<8x256xf32>
    %80 = arith.andi %26, %53 : vector<1x256xi1>
    %cst_34 = arith.constant 0.000000e+00 : f32
    %81 = vector.shape_cast %80 : vector<1x256xi1> to vector<1x256xi1>
    %82 = vector.broadcast %81 : vector<1x256xi1> to vector<8x256xi1>
    %83 = vector.broadcast %cst_34 : f32 to vector<8x256xf32>
    %84 = arith.select %82, %79, %83 : vector<8x256xi1>, vector<8x256xf32>
    %c2 = arith.constant 2 : index
    %c0_35 = arith.constant 0 : index
    %c0_36 = arith.constant 0 : index
    %85 = vector.load %arg5[%c2, %c0_35, %c0_36] : memref<9x8x1xf32, #tpu.memory_space<vmem>>, vector<1x8x1xf32>
    %86 = vector.shape_cast %85 : vector<1x8x1xf32> to vector<8x1xf32>
    %87 = vector.broadcast %86 : vector<8x1xf32> to vector<8x256xf32>
    %88 = arith.mulf %84, %87 : vector<8x256xf32>
    %89 = arith.addf %78, %88 : vector<8x256xf32>
    %c1_i32_37 = arith.constant 1 : i32
    %90 = tpu.dynamic_rotate %10 by %c1_i32_37 dim 1 : vector<8x256xf32>, i32 -> vector<8x256xf32>
    %cst_38 = arith.constant 0.000000e+00 : f32
    %91 = vector.shape_cast %44 : vector<1x256xi1> to vector<1x256xi1>
    %92 = vector.broadcast %91 : vector<1x256xi1> to vector<8x256xi1>
    %93 = vector.broadcast %cst_38 : f32 to vector<8x256xf32>
    %94 = arith.select %92, %90, %93 : vector<8x256xi1>, vector<8x256xf32>
    %c3 = arith.constant 3 : index
    %c0_39 = arith.constant 0 : index
    %c0_40 = arith.constant 0 : index
    %95 = vector.load %arg5[%c3, %c0_39, %c0_40] : memref<9x8x1xf32, #tpu.memory_space<vmem>>, vector<1x8x1xf32>
    %96 = vector.shape_cast %95 : vector<1x8x1xf32> to vector<8x1xf32>
    %97 = vector.broadcast %96 : vector<8x1xf32> to vector<8x256xf32>
    %98 = arith.mulf %94, %97 : vector<8x256xf32>
    %99 = arith.addf %89, %98 : vector<8x256xf32>
    %c255_i32 = arith.constant 255 : i32
    %100 = tpu.dynamic_rotate %10 by %c255_i32 dim 1 : vector<8x256xf32>, i32 -> vector<8x256xf32>
    %cst_41 = arith.constant 0.000000e+00 : f32
    %101 = vector.shape_cast %53 : vector<1x256xi1> to vector<1x256xi1>
    %102 = vector.broadcast %101 : vector<1x256xi1> to vector<8x256xi1>
    %103 = vector.broadcast %cst_41 : f32 to vector<8x256xf32>
    %104 = arith.select %102, %100, %103 : vector<8x256xi1>, vector<8x256xf32>
    %c5 = arith.constant 5 : index
    %c0_42 = arith.constant 0 : index
    %c0_43 = arith.constant 0 : index
    %105 = vector.load %arg5[%c5, %c0_42, %c0_43] : memref<9x8x1xf32, #tpu.memory_space<vmem>>, vector<1x8x1xf32>
    %106 = vector.shape_cast %105 : vector<1x8x1xf32> to vector<8x1xf32>
    %107 = vector.broadcast %106 : vector<8x1xf32> to vector<8x256xf32>
    %108 = arith.mulf %104, %107 : vector<8x256xf32>
    %109 = arith.addf %99, %108 : vector<8x256xf32>
    %c241_i32 = arith.constant 241 : i32
    %110 = tpu.dynamic_rotate %10 by %c241_i32 dim 1 : vector<8x256xf32>, i32 -> vector<8x256xf32>
    %111 = arith.andi %35, %44 : vector<1x256xi1>
    %cst_44 = arith.constant 0.000000e+00 : f32
    %112 = vector.shape_cast %111 : vector<1x256xi1> to vector<1x256xi1>
    %113 = vector.broadcast %112 : vector<1x256xi1> to vector<8x256xi1>
    %114 = vector.broadcast %cst_44 : f32 to vector<8x256xf32>
    %115 = arith.select %113, %110, %114 : vector<8x256xi1>, vector<8x256xf32>
    %c6 = arith.constant 6 : index
    %c0_45 = arith.constant 0 : index
    %c0_46 = arith.constant 0 : index
    %116 = vector.load %arg5[%c6, %c0_45, %c0_46] : memref<9x8x1xf32, #tpu.memory_space<vmem>>, vector<1x8x1xf32>
    %117 = vector.shape_cast %116 : vector<1x8x1xf32> to vector<8x1xf32>
    %118 = vector.broadcast %117 : vector<8x1xf32> to vector<8x256xf32>
    %119 = arith.mulf %115, %118 : vector<8x256xf32>
    %120 = arith.addf %109, %119 : vector<8x256xf32>
    %c240_i32 = arith.constant 240 : i32
    %121 = tpu.dynamic_rotate %10 by %c240_i32 dim 1 : vector<8x256xf32>, i32 -> vector<8x256xf32>
    %cst_47 = arith.constant 0.000000e+00 : f32
    %122 = vector.shape_cast %35 : vector<1x256xi1> to vector<1x256xi1>
    %123 = vector.broadcast %122 : vector<1x256xi1> to vector<8x256xi1>
    %124 = vector.broadcast %cst_47 : f32 to vector<8x256xf32>
    %125 = arith.select %123, %121, %124 : vector<8x256xi1>, vector<8x256xf32>
    %c7 = arith.constant 7 : index
    %c0_48 = arith.constant 0 : index
    %c0_49 = arith.constant 0 : index
    %126 = vector.load %arg5[%c7, %c0_48, %c0_49] : memref<9x8x1xf32, #tpu.memory_space<vmem>>, vector<1x8x1xf32>
    %127 = vector.shape_cast %126 : vector<1x8x1xf32> to vector<8x1xf32>
    %128 = vector.broadcast %127 : vector<8x1xf32> to vector<8x256xf32>
    %129 = arith.mulf %125, %128 : vector<8x256xf32>
    %130 = arith.addf %120, %129 : vector<8x256xf32>
    %c239_i32 = arith.constant 239 : i32
    %131 = tpu.dynamic_rotate %10 by %c239_i32 dim 1 : vector<8x256xf32>, i32 -> vector<8x256xf32>
    %132 = arith.andi %35, %53 : vector<1x256xi1>
    %cst_50 = arith.constant 0.000000e+00 : f32
    %133 = vector.shape_cast %132 : vector<1x256xi1> to vector<1x256xi1>
    %134 = vector.broadcast %133 : vector<1x256xi1> to vector<8x256xi1>
    %135 = vector.broadcast %cst_50 : f32 to vector<8x256xf32>
    %136 = arith.select %134, %131, %135 : vector<8x256xi1>, vector<8x256xf32>
    %c8 = arith.constant 8 : index
    %c0_51 = arith.constant 0 : index
    %c0_52 = arith.constant 0 : index
    %137 = vector.load %arg5[%c8, %c0_51, %c0_52] : memref<9x8x1xf32, #tpu.memory_space<vmem>>, vector<1x8x1xf32>
    %138 = vector.shape_cast %137 : vector<1x8x1xf32> to vector<8x1xf32>
    %139 = vector.broadcast %138 : vector<8x1xf32> to vector<8x256xf32>
    %140 = arith.mulf %136, %139 : vector<8x256xf32>
    %141 = arith.addf %130, %140 : vector<8x256xf32>
    %c0_53 = arith.constant 0 : index
    %c0_54 = arith.constant 0 : index
    %142 = vector.load %arg6[%c0_53, %c0_54] : memref<8x1xf32, #tpu.memory_space<vmem>>, vector<8x1xf32>
    %143 = vector.broadcast %142 : vector<8x1xf32> to vector<8x256xf32>
    %144 = arith.addf %141, %143 : vector<8x256xf32>
    %c0_55 = arith.constant 0 : index
    %c0_56 = arith.constant 0 : index
    %145 = vector.load %arg7[%c0_55, %c0_56] : memref<4x8xf32, #tpu.memory_space<vmem>>, vector<4x8xf32>
    %cst_57 = arith.constant dense<0.000000e+00> : vector<4x256xf32>
    %146 = tpu.matmul %145, %144, %cst_57 {dimension_numbers = #tpu.dot_dimension_numbers<[1], [0], [0], [1], [0, 0, 1, 1], [], []>} : vector<4x8xf32>, vector<8x256xf32>, vector<4x256xf32> -> vector<4x256xf32>
    %c0_58 = arith.constant 0 : index
    %c0_59 = arith.constant 0 : index
    %147 = vector.load %arg8[%c0_58, %c0_59] : memref<4x1xf32, #tpu.memory_space<vmem>>, vector<4x1xf32>
    %148 = vector.broadcast %147 : vector<4x1xf32> to vector<4x256xf32>
    %149 = arith.addf %146, %148 : vector<4x256xf32>
    %cst_60 = arith.constant 0.000000e+00 : f32
    %150 = vector.broadcast %cst_60 : f32 to vector<4x256xf32>
    %151 = arith.maximumf %149, %150 : vector<4x256xf32>
    %152 = tpu.concatenate %3, %151 in 0 : vector<4x256xf32>, vector<4x256xf32> -> vector<8x256xf32>
    %c0_61 = arith.constant 0 : index
    %c0_62 = arith.constant 0 : index
    %c0_63 = arith.constant 0 : index
    %153 = vector.load %arg9[%c0_61, %c0_62, %c0_63] : memref<1x8x256xf32, #tpu.memory_space<vmem>>, vector<1x8x256xf32>
    %154 = vector.shape_cast %153 : vector<1x8x256xf32> to vector<8x256xf32>
    %155 = vector.shape_cast %152 : vector<8x256xf32> to vector<1x8x256xf32>
    tpu.vector_store %arg9[%c0_61, %c0_62, %c0_63], %155 {strides = array<i32>} : memref<1x8x256xf32, #tpu.memory_space<vmem>>, vector<1x8x256xf32>,
    return
  }
  func.func @transform_0(%arg0: i32) -> (i32, i32, i32) {
    %c0_i32 = arith.constant 0 : i32
    %c0_i32_0 = arith.constant 0 : i32
    %c0_i32_1 = arith.constant 0 : i32
    return %arg0, %c0_i32, %c0_i32_0 : i32, i32, i32
  }
  func.func @transform_1(%arg0: i32) -> (i32, i32) {
    %c0_i32 = arith.constant 0 : i32
    %c0_i32_0 = arith.constant 0 : i32
    %c0_i32_1 = arith.constant 0 : i32
    return %c0_i32, %c0_i32_0 : i32, i32
  }
  func.func @transform_2(%arg0: i32) -> (i32, i32) {
    %c0_i32 = arith.constant 0 : i32
    %c0_i32_0 = arith.constant 0 : i32
    %c0_i32_1 = arith.constant 0 : i32
    return %c0_i32, %c0_i32_0 : i32, i32
  }
  func.func @transform_3(%arg0: i32) -> (i32, i32) {
    %c0_i32 = arith.constant 0 : i32
    %c0_i32_0 = arith.constant 0 : i32
    %c0_i32_1 = arith.constant 0 : i32
    return %c0_i32, %c0_i32_0 : i32, i32
  }
  func.func @transform_4(%arg0: i32) -> (i32, i32, i32) {
    %c0_i32 = arith.constant 0 : i32
    %c0_i32_0 = arith.constant 0 : i32
    %c0_i32_1 = arith.constant 0 : i32
    %c0_i32_2 = arith.constant 0 : i32
    return %c0_i32, %c0_i32_0, %c0_i32_1 : i32, i32, i32
  }
  func.func @transform_5(%arg0: i32) -> (i32, i32) {
    %c0_i32 = arith.constant 0 : i32
    %c0_i32_0 = arith.constant 0 : i32
    %c0_i32_1 = arith.constant 0 : i32
    return %c0_i32, %c0_i32_0 : i32, i32
  }
  func.func @transform_6(%arg0: i32) -> (i32, i32) {
    %c0_i32 = arith.constant 0 : i32
    %c0_i32_0 = arith.constant 0 : i32
    %c0_i32_1 = arith.constant 0 : i32
    return %c0_i32, %c0_i32_0 : i32, i32
  }
  func.func @transform_7(%arg0: i32) -> (i32, i32) {
    %c0_i32 = arith.constant 0 : i32
    %c0_i32_0 = arith.constant 0 : i32
    %c0_i32_1 = arith.constant 0 : i32
    return %c0_i32, %c0_i32_0 : i32, i32
  }
  func.func @transform_8(%arg0: i32) -> (i32, i32, i32) {
    %c0_i32 = arith.constant 0 : i32
    %c0_i32_0 = arith.constant 0 : i32
    %c0_i32_1 = arith.constant 0 : i32
    return %arg0, %c0_i32, %c0_i32_0 : i32, i32, i32
  }
}

</mosaic_0001>

<llo_original>
// kernel: shufflenet_block_forward.1
$region0: #{shufflenet_block_forward.1}
  #allocation0 [shape = 'u32[]', space=smem, size = 0x4, offset = 0x4, fixed_abs, tag = 'smem constant byte address 0x4 - core index']
  #allocation1 [shape = 'u32[144,128]{1,0:T(1,128)}', space=vmem, size = 0x12000, scoped, tag = 'internal scratch']
  %s0 = inlined_call_operand.vmem [shape: f32[2,8,256], index: 0, kind: input, shape index: {}]
  %s1 = inlined_call_operand.vmem [shape: f32[4,8], index: 1, kind: input, shape index: {}]
  %s2 = inlined_call_operand.vmem [shape: f32[8,8], index: 2, kind: input, shape index: {}]
  %s3 = inlined_call_operand.vmem [shape: f32[8,1], index: 3, kind: input, shape index: {}]
  %s4 = inlined_call_operand.vmem [shape: f32[9,8,1], index: 4, kind: input, shape index: {}]
  %s5 = inlined_call_operand.vmem [shape: f32[8,1], index: 5, kind: input, shape index: {}]
  %s6 = inlined_call_operand.vmem [shape: f32[4,8], index: 6, kind: input, shape index: {}]
  %s7 = inlined_call_operand.vmem [shape: f32[4,1], index: 7, kind: input, shape index: {}]
  %s8 = inlined_call_operand.vmem [shape: f32[2,8,256], index: 8, kind: output, shape index: {}]
  %s9 = sld [smem:[#allocation0]]
  $region65: #{shufflenet_block_forward.1} parent=0
    _
  %s11 = ssub.s32 1, %s9
  %s12 = scalar_select 0, %s11, %s9
  loop: start=0, step=1, limit=4
  $region2: #{shufflenet_block_forward.1} parent=0 // loop_pre_header
    _
  $region3: #{shufflenet_block_forward.1} parent=0 // loop_header
    %s14 = sphi 0, %s18
    %p15 = scmp.ge.s32.totalorder %s14, 4
    %s24 = sphi 0, %s26
    %s27 = sphi 0, %s24
    %s28 = sphi 0, %s27
    %s44 = sphi 0, %s28
    %s48 = sphi 0, %s48
    %s50 = sphi 0, %s48
    %s51 = sphi 0, %s50
    %s65 = sphi 0, %s51
    %s69 = sphi 0, %s69
    %s71 = sphi 0, %s69
    %s72 = sphi 0, %s71
    %s86 = sphi 0, %s72
    %s90 = sphi 0, %s90
    %s92 = sphi 0, %s90
    %s93 = sphi 0, %s92
    %s107 = sphi 0, %s93
    %s111 = sphi 0, %s111
    %s113 = sphi 0, %s111
    %s114 = sphi 0, %s113
    %s128 = sphi 0, %s114
    %s132 = sphi 0, %s132
    %s134 = sphi 0, %s132
    %s135 = sphi 0, %s134
    %s149 = sphi 0, %s135
    %s153 = sphi 0, %s153
    %s155 = sphi 0, %s153
    %s156 = sphi 0, %s155
    %s170 = sphi 0, %s156
    %s174 = sphi 0, %s174
    %s176 = sphi 0, %s174
    %s177 = sphi 0, %s176
    %s191 = sphi 0, %s177
    %s197 = sphi 0, %s199
    %s200 = sphi 0, %s197
    %s201 = sphi 0, %s200
    %s217 = sphi 0, %s201
  $region4: #{shufflenet_block_forward.1} parent=0 // loop_header_branch
    %17 = sbr.rel (%p15) target = $region8
  $region5: #{shufflenet_block_forward.1} parent=0 // loop_body
    %s19 = ssub.s32 %s14, 1
    %s20 = ssub.s32 %s14, 2
    %s21 = sadd.s32 %s14, 1
    %s22 = ssub.s32 %s14, %s21
    %p23 = scmp.eq.s32.totalorder %s22, 0
    %s25 = sadd.s32 %s24, 1
    %s26 = scalar_select %p23, %s24, %s25
    %p29 = pneg %p23
    %p30 = scmp.eq.s32.totalorder %s14, 1
    %p31 = por %p29, %p30
    %p32 = scmp.ne.s32.totalorder %s24, %s27
    %p33 = scmp.eq.s32.totalorder %s14, 0
    %p34 = por %p32, %p33
    %p35 = scmp.ne.s32.totalorder %s24, %s27
    %p36 = scmp.eq.s32.totalorder %s19, 1
    %p37 = por %p35, %p36
    %p38 = scmp.ne.s32.totalorder %s27, %s28
    %p39 = scmp.eq.s32.totalorder %s19, 0
    %p40 = por %p38, %p39
    %p41 = scmp.ne.s32.totalorder %s27, %s28
    %p42 = scmp.eq.s32.totalorder %s20, 1
    %p43 = por %p41, %p42
    %p45 = scmp.ne.s32.totalorder %s28, %s44
    %p46 = scmp.eq.s32.totalorder %s20, 0
    %p47 = por %p45, %p46
    %s49 = sadd.s32 %s48, 1
    %p52 = scmp.eq.s32.totalorder %s14, 1
    %p53 = scmp.ne.s32.totalorder %s48, %s50
    %p54 = scmp.eq.s32.totalorder %s14, 0
    %p55 = por %p53, %p54
    %p56 = scmp.ne.s32.totalorder %s48, %s50
    %p57 = scmp.eq.s32.totalorder %s19, 1
    %p58 = por %p56, %p57
    %p59 = scmp.ne.s32.totalorder %s50, %s51
    %p60 = scmp.eq.s32.totalorder %s19, 0
    %p61 = por %p59, %p60
    %p62 = scmp.ne.s32.totalorder %s50, %s51
    %p63 = scmp.eq.s32.totalorder %s20, 1
    %p64 = por %p62, %p63
    %p66 = scmp.ne.s32.totalorder %s51, %s65
    %p67 = scmp.eq.s32.totalorder %s20, 0
    %p68 = por %p66, %p67
    %s70 = sadd.s32 %s69, 1
    %p73 = scmp.eq.s32.totalorder %s14, 1
    %p74 = scmp.ne.s32.totalorder %s69, %s71
    %p75 = scmp.eq.s32.totalorder %s14, 0
    %p76 = por %p74, %p75
    %p77 = scmp.ne.s32.totalorder %s69, %s71
    %p78 = scmp.eq.s32.totalorder %s19, 1
    %p79 = por %p77, %p78
    %p80 = scmp.ne.s32.totalorder %s71, %s72
    %p81 = scmp.eq.s32.totalorder %s19, 0
    %p82 = por %p80, %p81
    %p83 = scmp.ne.s32.totalorder %s71, %s72
    %p84 = scmp.eq.s32.totalorder %s20, 1
    %p85 = por %p83, %p84
    %p87 = scmp.ne.s32.totalorder %s72, %s86
    %p88 = scmp.eq.s32.totalorder %s20, 0
    %p89 = por %p87, %p88
    %s91 = sadd.s32 %s90, 1
    %p94 = scmp.eq.s32.totalorder %s14, 1
    %p95 = scmp.ne.s32.totalorder %s90, %s92
    %p96 = scmp.eq.s32.totalorder %s14, 0
    %p97 = por %p95, %p96
    %p98 = scmp.ne.s32.totalorder %s90, %s92
    %p99 = scmp.eq.s32.totalorder %s19, 1
    %p100 = por %p98, %p99
    %p101 = scmp.ne.s32.totalorder %s92, %s93
    %p102 = scmp.eq.s32.totalorder %s19, 0
    %p103 = por %p101, %p102
    %p104 = scmp.ne.s32.totalorder %s92, %s93
    %p105 = scmp.eq.s32.totalorder %s20, 1
    %p106 = por %p104, %p105
    %p108 = scmp.ne.s32.totalorder %s93, %s107
    %p109 = scmp.eq.s32.totalorder %s20, 0
    %p110 = por %p108, %p109
    %s112 = sadd.s32 %s111, 1
    %p115 = scmp.eq.s32.totalorder %s14, 1
    %p116 = scmp.ne.s32.totalorder %s111, %s113
    %p117 = scmp.eq.s32.totalorder %s14, 0
    %p118 = por %p116, %p117
    %p119 = scmp.ne.s32.totalorder %s111, %s113
    %p120 = scmp.eq.s32.totalorder %s19, 1
    %p121 = por %p119, %p120
    %p122 = scmp.ne.s32.totalorder %s113, %s114
    %p123 = scmp.eq.s32.totalorder %s19, 0
    %p124 = por %p122, %p123
    %p125 = scmp.ne.s32.totalorder %s113, %s114
    %p126 = scmp.eq.s32.totalorder %s20, 1
    %p127 = por %p125, %p126
    %p129 = scmp.ne.s32.totalorder %s114, %s128
    %p130 = scmp.eq.s32.totalorder %s20, 0
    %p131 = por %p129, %p130
    %s133 = sadd.s32 %s132, 1
    %p136 = scmp.eq.s32.totalorder %s14, 1
    %p137 = scmp.ne.s32.totalorder %s132, %s134
    %p138 = scmp.eq.s32.totalorder %s14, 0
    %p139 = por %p137, %p138
    %p140 = scmp.ne.s32.totalorder %s132, %s134
    %p141 = scmp.eq.s32.totalorder %s19, 1
    %p142 = por %p140, %p141
    %p143 = scmp.ne.s32.totalorder %s134, %s135
    %p144 = scmp.eq.s32.totalorder %s19, 0
    %p145 = por %p143, %p144
    %p146 = scmp.ne.s32.totalorder %s134, %s135
    %p147 = scmp.eq.s32.totalorder %s20, 1
    %p148 = por %p146, %p147
    %p150 = scmp.ne.s32.totalorder %s135, %s149
    %p151 = scmp.eq.s32.totalorder %s20, 0
    %p152 = por %p150, %p151
    %s154 = sadd.s32 %s153, 1
    %p157 = scmp.eq.s32.totalorder %s14, 1
    %p158 = scmp.ne.s32.totalorder %s153, %s155
    %p159 = scmp.eq.s32.totalorder %s14, 0
    %p160 = por %p158, %p159
    %p161 = scmp.ne.s32.totalorder %s153, %s155
    %p162 = scmp.eq.s32.totalorder %s19, 1
    %p163 = por %p161, %p162
    %p164 = scmp.ne.s32.totalorder %s155, %s156
    %p165 = scmp.eq.s32.totalorder %s19, 0
    %p166 = por %p164, %p165
    %p167 = scmp.ne.s32.totalorder %s155, %s156
    %p168 = scmp.eq.s32.totalorder %s20, 1
    %p169 = por %p167, %p168
    %p171 = scmp.ne.s32.totalorder %s156, %s170
    %p172 = scmp.eq.s32.totalorder %s20, 0
    %p173 = por %p171, %p172
    %s175 = sadd.s32 %s174, 1
    %p178 = scmp.eq.s32.totalorder %s14, 1
    %p179 = scmp.ne.s32.totalorder %s174, %s176
    %p180 = scmp.eq.s32.totalorder %s14, 0
    %p181 = por %p179, %p180
    %p182 = scmp.ne.s32.totalorder %s174, %s176
    %p183 = scmp.eq.s32.totalorder %s19, 1
    %p184 = por %p182, %p183
    %p185 = scmp.ne.s32.totalorder %s176, %s177
    %p186 = scmp.eq.s32.totalorder %s19, 0
    %p187 = por %p185, %p186
    %p188 = scmp.ne.s32.totalorder %s176, %s177
    %p189 = scmp.eq.s32.totalorder %s20, 1
    %p190 = por %p188, %p189
    %p192 = scmp.ne.s32.totalorder %s177, %s191
    %p193 = scmp.eq.s32.totalorder %s20, 0
    %p194 = por %p192, %p193
    %s195 = ssub.s32 %s14, %s21
    %p196 = scmp.eq.s32.totalorder %s195, 0
    %s198 = sadd.s32 %s197, 1
    %s199 = scalar_select %p196, %s197, %s198
    %p202 = pneg %p196
    %p203 = scmp.eq.s32.totalorder %s14, 1
    %p204 = por %p202, %p203
    %p205 = scmp.ne.s32.totalorder %s197, %s200
    %p206 = scmp.eq.s32.totalorder %s14, 0
    %p207 = por %p205, %p206
    %p208 = scmp.ne.s32.totalorder %s197, %s200
    %p209 = scmp.eq.s32.totalorder %s19, 1
    %p210 = por %p208, %p209
    %p211 = scmp.ne.s32.totalorder %s200, %s201
    %p212 = scmp.eq.s32.totalorder %s19, 0
    %p213 = por %p211, %p212
    %p214 = scmp.ne.s32.totalorder %s200, %s201
    %p215 = scmp.eq.s32.totalorder %s20, 1
    %p216 = por %p214, %p215
    %p218 = scmp.ne.s32.totalorder %s201, %s217
    %p219 = scmp.eq.s32.totalorder %s20, 0
    %p220 = por %p218, %p219
    %p221 = scmp.le.s32.totalorder 1, %s14
    %p222 = scmp.lt.s32.totalorder %s14, 3
    %p223 = pnand %p221, %p222
    %p224 = pneg %p223
    // Predicated region
    $region9: #{shufflenet_block_forward.1} parent=5 // pred_check
      _
    $region10: #{shufflenet_block_forward.1} parent=5 // pred_check_branch
      %226 = sbr.rel (%p223) target = $region12
    $region11: #{shufflenet_block_forward.1} parent=5 // pred_region
      %s227 = ssub.s32 %s14, 1
      // Predicated region
      $region13: #{shufflenet_block_forward.1} parent=11 // pred_check
        %p228 = pneg %p61
      $region14: #{shufflenet_block_forward.1} parent=11 // pred_check_branch
        %230 = sbr.rel (%p228) target = $region16
      $region15: #{shufflenet_block_forward.1} parent=11 // pred_region
        _
      $region16: #{shufflenet_block_forward.1} parent=11 // pred_fallthru
        _
      // Predicated region
      $region17: #{shufflenet_block_forward.1} parent=11 // pred_check
        %p231 = pneg %p82
      $region18: #{shufflenet_block_forward.1} parent=11 // pred_check_branch
        %233 = sbr.rel (%p231) target = $region20
      $region19: #{shufflenet_block_forward.1} parent=11 // pred_region
        _
      $region20: #{shufflenet_block_forward.1} parent=11 // pred_fallthru
        _
      // Predicated region
      $region21: #{shufflenet_block_forward.1} parent=11 // pred_check
        %p234 = pneg %p103
      $region22: #{shufflenet_block_forward.1} parent=11 // pred_check_branch
        %236 = sbr.rel (%p234) target = $region24
      $region23: #{shufflenet_block_forward.1} parent=11 // pred_region
        _
      $region24: #{shufflenet_block_forward.1} parent=11 // pred_fallthru
        _
      // Predicated region
      $region25: #{shufflenet_block_forward.1} parent=11 // pred_check
        %p237 = pneg %p124
      $region26: #{shufflenet_block_forward.1} parent=11 // pred_check_branch
        %239 = sbr.rel (%p237) target = $region28
      $region27: #{shufflenet_block_forward.1} parent=11 // pred_region
        _
      $region28: #{shufflenet_block_forward.1} parent=11 // pred_fallthru
        _
      // Predicated region
      $region29: #{shufflenet_block_forward.1} parent=11 // pred_check
        %p240 = pneg %p145
      $region30: #{shufflenet_block_forward.1} parent=11 // pred_check_branch
        %242 = sbr.rel (%p240) target = $region32
      $region31: #{shufflenet_block_forward.1} parent=11 // pred_region
        _
      $region32: #{shufflenet_block_forward.1} parent=11 // pred_fallthru
        _
      // Predicated region
      $region33: #{shufflenet_block_forward.1} parent=11 // pred_check
        %p243 = pneg %p166
      $region34: #{shufflenet_block_forward.1} parent=11 // pred_check_branch
        %245 = sbr.rel (%p243) target = $region36
      $region35: #{shufflenet_block_forward.1} parent=11 // pred_region
        _
      $region36: #{shufflenet_block_forward.1} parent=11 // pred_fallthru
        _
      // Predicated region
      $region37: #{shufflenet_block_forward.1} parent=11 // pred_check
        %p246 = pneg %p187
      $region38: #{shufflenet_block_forward.1} parent=11 // pred_check_branch
        %248 = sbr.rel (%p246) target = $region40
      $region39: #{shufflenet_block_forward.1} parent=11 // pred_region
        _
      $region40: #{shufflenet_block_forward.1} parent=11 // pred_fallthru
        _
    $region12: #{shufflenet_block_forward.1} parent=5 // pred_fallthru
      _
    %p249 = scmp.lt.s32.totalorder %s14, 2
    // Predicated region
    $region41: #{shufflenet_block_forward.1} parent=5 // pred_check
      %p250 = pneg %p249
    $region42: #{shufflenet_block_forward.1} parent=5 // pred_check_branch
      %252 = sbr.rel (%p250) target = $region44
    $region43: #{shufflenet_block_forward.1} parent=5 // pred_region
      // Predicated region
      $region45: #{shufflenet_block_forward.1} parent=43 // pred_check
        %p253 = pneg %p34
      $region46: #{shufflenet_block_forward.1} parent=43 // pred_check_branch
        %255 = sbr.rel (%p253) target = $region48
      $region47: #{shufflenet_block_forward.1} parent=43 // pred_region
        %p256 = scmp.lt.s32.totalorder %s14, 1
        %s257 = scalar_select %p256, %s14, 1
        %s258 = smul.addr %s257, 2
        %s259 = smul.addr %s258, 8
        %s260 = scalar_lea.vmem %s0, %s259
      $region48: #{shufflenet_block_forward.1} parent=43 // pred_fallthru
        _
    $region44: #{shufflenet_block_forward.1} parent=5 // pred_fallthru
      _
    %p261 = scmp.le.s32.totalorder 1, %s14
    %p262 = scmp.lt.s32.totalorder %s14, 3
    %p263 = pnand %p261, %p262
    %p264 = pneg %p263
    // Predicated region
    $region49: #{shufflenet_block_forward.1} parent=5 // pred_check
      _
    $region50: #{shufflenet_block_forward.1} parent=5 // pred_check_branch
      %266 = sbr.rel (%p263) target = $region52
    $region51: #{shufflenet_block_forward.1} parent=5 // pred_region
      %s267 = ssub.s32 %s14, 1
      %p268 = scmp.lt.s32.totalorder %s19, 1
      %s269 = scalar_select %p268, %s19, 1
      %s270 = smul.addr %s269, 2
      %s271 = smul.addr %s270, 8
      %s272 = scalar_lea.vmem %s0, %s271
      %p273 = pneg %p40
      %p274 = pneg %p37
      %p275 = pneg %p61
      %p276 = pneg %p58
      %p277 = pneg %p82
      %p278 = pneg %p79
      %p279 = pneg %p103
      %p280 = pneg %p100
      %p281 = pneg %p124
      %p282 = pneg %p121
      %p283 = pneg %p145
      %p284 = pneg %p142
      %p285 = pneg %p166
      %p286 = pneg %p163
      %p287 = pneg %p187
      %p288 = pneg %p184
      %p289 = pneg %p213
      %p290 = pneg %p210
      %p291 = scmp.lt.s32.totalorder %s19, 1
      %s292 = scalar_select %p291, %s19, 1
      %s293 = smul.addr %s292, 2
      %s294 = smul.addr %s293, 8
      %s295 = scalar_lea.vmem %s8, %s294
      %p296 = scmp.lt.s32.totalorder %s19, 1
      %s297 = scalar_select %p296, %s19, 1
      %s298 = smul.addr %s297, 2
      %s299 = smul.addr %s298, 8
      %s300 = scalar_lea.vmem %s0, %s299
      %p301 = scmp.lt.s32.totalorder %s19, 1
      %s302 = scalar_select %p301, %s19, 1
      %s303 = smul.addr %s302, 2
      %s304 = smul.addr %s303, 8
      %s305 = scalar_lea.vmem %s8, %s304
      %v306 = vld [vmem:[%s300] sm:$0xff]
      %v307 = vld [vmem:[%s300 + $0x8] sm:$0xff]
      %v308 = vld [vmem:[%s1] sm:$0xf]
      %vm309 = vcmask 64512
      %v311 = vsel %vm309, %v308, 0
      %313 = vmatprep.subr.mxu0 0.0
      %314 = vmatpush1.msra.mxu0 0.0
      %315 = vmatprep.subr.mxu0 0.0
      %316 = vmatpush1.msra.mxu0 0.0
      %317 = vmatprep.subr.mxu0 0.0
      %318 = vmatpush1.msra.mxu0 0.0
      %319 = vmatprep.subr.mxu0 0.0
      %320 = vmatpush1.msra.mxu0 0.0
      %321 = vmatprep.subr.mxu0 0.0
      %322 = vmatpush1.msra.mxu0 0.0
      %323 = vmatprep.subr.mxu0 0.0
      %324 = vmatpush1.msra.mxu0 0.0
      %325 = vmatprep.subr.mxu0 0.0
      %326 = vmatpush1.msra.mxu0 0.0
      %327 = vmatprep.subr.mxu0 0.0
      %328 = vmatpush1.msra.mxu0 0.0
      %329 = vmatprep.subr.mxu0 0.0
      %330 = vmatpush1.msra.mxu0 0.0
      %331 = vmatprep.subr.mxu0 0.0
      %332 = vmatpush1.msra.mxu0 0.0
      %333 = vmatprep.subr.mxu0 0.0
      %334 = vmatpush1.msra.mxu0 0.0
      %335 = vmatprep.subr.mxu0 0.0
      %336 = vmatpush1.msra.mxu0 0.0
      %337 = vmatprep.subr.mxu0 0.0
      %338 = vmatpush1.msra.mxu0 0.0
      %339 = vmatprep.subr.mxu0 0.0
      %340 = vmatpush1.msra.mxu0 0.0
      %341 = vmatprep.subr.mxu0 0.0
      %342 = vmatpush1.msra.mxu0 0.0
      %343 = vmatprep.subr.mxu0 %v307
      %344 = vmatpush1.msra.mxu0 %v306
      %345 = vmatprep.subr.mxu0 0.0
      %346 = vmatpush2.msra.mxu0 0.0
      %347 = vmatprep.subr.mxu0 0.0
      %348 = vmatpush2.msra.mxu0 0.0
      %349 = vmatprep.subr.mxu0 0.0
      %350 = vmatpush2.msra.mxu0 0.0
      %351 = vmatprep.subr.mxu0 0.0
      %352 = vmatpush2.msra.mxu0 0.0
      %353 = vmatprep.subr.mxu0 0.0
      %354 = vmatpush2.msra.mxu0 0.0
      %355 = vmatprep.subr.mxu0 0.0
      %356 = vmatpush2.msra.mxu0 0.0
      %357 = vmatprep.subr.mxu0 0.0
      %358 = vmatpush2.msra.mxu0 0.0
      %359 = vmatprep.subr.mxu0 0.0
      %360 = vmatpush2.msra.mxu0 0.0
      %361 = vmatprep.subr.mxu0 0.0
      %362 = vmatpush2.msra.mxu0 0.0
      %363 = vmatprep.subr.mxu0 0.0
      %364 = vmatpush2.msra.mxu0 0.0
      %365 = vmatprep.subr.mxu0 0.0
      %366 = vmatpush2.msra.mxu0 0.0
      %367 = vmatprep.subr.mxu0 0.0
      %368 = vmatpush2.msra.mxu0 0.0
      %369 = vmatprep.subr.mxu0 0.0
      %370 = vmatpush2.msra.mxu0 0.0
      %371 = vmatprep.subr.mxu0 0.0
      %372 = vmatpush2.msra.mxu0 0.0
      %373 = vmatprep.subr.mxu0 0.0
      %374 = vmatpush2.msra.mxu0 0.0
      %375 = vmatprep.subr.mxu0 0.0
      %376 = vmatpush2.msra.mxu0 0.0
      %377 = vmatprep.mubr.f32.mxu0 0.0
      %378 = vmatmul.mubr.f32.gmra.mxu0 %v311
      %v379 = vpop.f32.mrf.mxu0
      %v380 = vadd.f32 0.0, %v379
      %v381 = vpop.f32.mrf.mxu0
      %v382 = vadd.f32 0.0, %v381
      %383 = vdwg.mxu0
      %v384 = vld [vmem:[%s2] sm:$0xff]
      %v385 = vld [vmem:[%s3] sm:$0xff]
      %387 = vset.pattern.permute.xlu0 0
      %388 = vperm.xlu0 %387, %v385
      %v389 = vpop.permute.xlu0 %388
      %v392 = vsel %vm309, %v384, 0
      %394 = vmatprep.subr.mxu0 0.0
      %395 = vmatpush1.msra.mxu0 0.0
      %396 = vmatprep.subr.mxu0 0.0
      %397 = vmatpush1.msra.mxu0 0.0
      %398 = vmatprep.subr.mxu0 0.0
      %399 = vmatpush1.msra.mxu0 0.0
      %400 = vmatprep.subr.mxu0 0.0
      %401 = vmatpush1.msra.mxu0 0.0
      %402 = vmatprep.subr.mxu0 0.0
      %403 = vmatpush1.msra.mxu0 0.0
      %404 = vmatprep.subr.mxu0 0.0
      %405 = vmatpush1.msra.mxu0 0.0
      %406 = vmatprep.subr.mxu0 0.0
      %407 = vmatpush1.msra.mxu0 0.0
      %408 = vmatprep.subr.mxu0 0.0
      %409 = vmatpush1.msra.mxu0 0.0
      %410 = vmatprep.subr.mxu0 0.0
      %411 = vmatpush1.msra.mxu0 0.0
      %412 = vmatprep.subr.mxu0 0.0
      %413 = vmatpush1.msra.mxu0 0.0
      %414 = vmatprep.subr.mxu0 0.0
      %415 = vmatpush1.msra.mxu0 0.0
      %416 = vmatprep.subr.mxu0 0.0
      %417 = vmatpush1.msra.mxu0 0.0
      %418 = vmatprep.subr.mxu0 0.0
      %419 = vmatpush1.msra.mxu0 0.0
      %420 = vmatprep.subr.mxu0 0.0
      %421 = vmatpush1.msra.mxu0 0.0
      %422 = vmatprep.subr.mxu0 0.0
      %423 = vmatpush1.msra.mxu0 0.0
      %424 = vmatprep.subr.mxu0 %v307
      %425 = vmatpush1.msra.mxu0 %v306
      %426 = vmatprep.subr.mxu0 0.0
      %427 = vmatpush2.msra.mxu0 0.0
      %428 = vmatprep.subr.mxu0 0.0
      %429 = vmatpush2.msra.mxu0 0.0
      %430 = vmatprep.subr.mxu0 0.0
      %431 = vmatpush2.msra.mxu0 0.0
      %432 = vmatprep.subr.mxu0 0.0
      %433 = vmatpush2.msra.mxu0 0.0
      %434 = vmatprep.subr.mxu0 0.0
      %435 = vmatpush2.msra.mxu0 0.0
      %436 = vmatprep.subr.mxu0 0.0
      %437 = vmatpush2.msra.mxu0 0.0
      %438 = vmatprep.subr.mxu0 0.0
      %439 = vmatpush2.msra.mxu0 0.0
      %440 = vmatprep.subr.mxu0 0.0
      %441 = vmatpush2.msra.mxu0 0.0
      %442 = vmatprep.subr.mxu0 0.0
      %443 = vmatpush2.msra.mxu0 0.0
      %444 = vmatprep.subr.mxu0 0.0
      %445 = vmatpush2.msra.mxu0 0.0
      %446 = vmatprep.subr.mxu0 0.0
      %447 = vmatpush2.msra.mxu0 0.0
      %448 = vmatprep.subr.mxu0 0.0
      %449 = vmatpush2.msra.mxu0 0.0
      %450 = vmatprep.subr.mxu0 0.0
      %451 = vmatpush2.msra.mxu0 0.0
      %452 = vmatprep.subr.mxu0 0.0
      %453 = vmatpush2.msra.mxu0 0.0
      %454 = vmatprep.subr.mxu0 0.0
      %455 = vmatpush2.msra.mxu0 0.0
      %456 = vmatprep.subr.mxu0 0.0
      %457 = vmatpush2.msra.mxu0 0.0
      %458 = vmatprep.mubr.f32.mxu0 0.0
      %459 = vmatmul.mubr.f32.gmra.mxu0 %v392
      %v460 = vpop.f32.mrf.mxu0
      %v461 = vadd.f32 %v389, %v460
      %v462 = vpop.f32.mrf.mxu0
      %v463 = vadd.f32 %v389, %v462
      %464 = vdwg.mxu0
      %v465 = vmax.f32 %v461, 0.0
      %v466 = vmax.f32 %v463, 0.0
      %v467 = vlaneseq
      %v468 = vand.u32 %v467, 127
      %v469 = vadd.s32 %v468, 128
      %v470 = vand.u32 %v468, 15
      %v471 = vand.u32 %v469, 15
      %v472 = vshra.s32 %v468, 4
      %v473 = vshra.s32 %v469, 4
      %v474 = vand.u32 %v472, 15
      %v475 = vand.u32 %v473, 15
      %v476 = vadd.s32 %v474, 4294967295
      %v477 = vadd.s32 %v475, 4294967295
      %vm478 = vcmp.ge.s32.totalorder %v476, 0
      %vm479 = vcmp.ge.s32.totalorder %v477, 0
      %vm480 = vcmp.lt.s32.totalorder %v476, 16
      %vm481 = vcmp.lt.s32.totalorder %v477, 16
      %vm482 = vmand %vm478, %vm480
      %vm483 = vmand %vm479, %vm481
      %v484 = vadd.s32 %v474, 1
      %v485 = vadd.s32 %v475, 1
      %vm486 = vcmp.ge.s32.totalorder %v484, 0
      %vm487 = vcmp.ge.s32.totalorder %v485, 0
      %vm488 = vcmp.lt.s32.totalorder %v484, 16
      %vm489 = vcmp.lt.s32.totalorder %v485, 16
      %vm490 = vmand %vm486, %vm488
      %vm491 = vmand %vm487, %vm489
      %v492 = vadd.s32 %v470, 4294967295
      %v493 = vadd.s32 %v471, 4294967295
      %vm494 = vcmp.ge.s32.totalorder %v492, 0
      %vm495 = vcmp.ge.s32.totalorder %v493, 0
      %vm496 = vcmp.lt.s32.totalorder %v492, 16
      %vm497 = vcmp.lt.s32.totalorder %v493, 16
      %vm498 = vmand %vm494, %vm496
      %vm499 = vmand %vm495, %vm497
      %v500 = vadd.s32 %v470, 1
      %v501 = vadd.s32 %v471, 1
      %vm502 = vcmp.ge.s32.totalorder %v500, 0
      %vm503 = vcmp.ge.s32.totalorder %v501, 0
      %vm504 = vcmp.lt.s32.totalorder %v500, 16
      %vm505 = vcmp.lt.s32.totalorder %v501, 16
      %vm506 = vmand %vm502, %vm504
      %vm507 = vmand %vm503, %vm505
      %s508 = scalar_lea.vmem %s4, 32
      %v509 = vld [vmem:[%s508] sm:$0xff]
      %511 = vset.pattern.permute.xlu0 0
      %512 = vperm.xlu0 %511, %v509
      %v513 = vpop.permute.xlu0 %512
      %v515 = vmul.f32 %v465, %v513
      %v516 = vmul.f32 %v466, %v513
      %517 = vrot.lane.b32.xlu0 %v465, 17
      %v518 = vpop.permute.xlu0 %517
      %519 = vrot.lane.b32.xlu0 %v466, 17
      %v520 = vpop.permute.xlu0 %519
      %vm521 = vcmp.lt.s32.totalorder %v468, 17
      %v522 = vsel %vm521, %v518, %v520
      %v523 = vsel %vm521, %v520, %v518
      %vm524 = vmand %vm482, %vm498
      %vm525 = vmand %vm483, %vm499
      %v526 = vsel %vm524, 1, 0
      %v527 = vsel %vm525, 1, 0
      %vm528 = vcmp.eq.s32.totalorder %v526, 1
      %vm529 = vcmp.eq.s32.totalorder %v527, 1
      %v530 = vsel %vm528, %v523, 0.0
      %v531 = vsel %vm529, %v522, 0.0
      %v532 = vld [vmem:[%s4] sm:$0xff]
      %534 = vset.pattern.permute.xlu0 0
      %535 = vperm.xlu0 %534, %v532
      %v536 = vpop.permute.xlu0 %535
      %v538 = vmul.f32 %v530, %v536
      %v539 = vmul.f32 %v531, %v536
      %v540 = vadd.f32 %v515, %v538
      %v541 = vadd.f32 %v516, %v539
      %542 = vrot.lane.b32.xlu0 %v465, 16
      %v543 = vpop.permute.xlu0 %542
      %544 = vrot.lane.b32.xlu0 %v466, 16
      %v545 = vpop.permute.xlu0 %544
      %vm546 = vcmp.lt.s32.totalorder %v468, 16
      %v547 = vsel %vm546, %v543, %v545
      %v548 = vsel %vm546, %v545, %v543
      %v549 = vsel %vm482, 1, 0
      %v550 = vsel %vm483, 1, 0
      %vm551 = vcmp.eq.s32.totalorder %v549, 1
      %vm552 = vcmp.eq.s32.totalorder %v550, 1
      %v553 = vsel %vm551, %v548, 0.0
      %v554 = vsel %vm552, %v547, 0.0
      %s555 = scalar_lea.vmem %s4, 8
      %v556 = vld [vmem:[%s555] sm:$0xff]
      %558 = vset.pattern.permute.xlu0 0
      %559 = vperm.xlu0 %558, %v556
      %v560 = vpop.permute.xlu0 %559
      %v562 = vmul.f32 %v553, %v560
      %v563 = vmul.f32 %v554, %v560
      %v564 = vadd.f32 %v540, %v562
      %v565 = vadd.f32 %v541, %v563
      %566 = vrot.lane.b32.xlu0 %v465, 15
      %v567 = vpop.permute.xlu0 %566
      %568 = vrot.lane.b32.xlu0 %v466, 15
      %v569 = vpop.permute.xlu0 %568
      %vm570 = vcmp.lt.s32.totalorder %v468, 15
      %v571 = vsel %vm570, %v567, %v569
      %v572 = vsel %vm570, %v569, %v567
      %vm573 = vmand %vm482, %vm506
      %vm574 = vmand %vm483, %vm507
      %v575 = vsel %vm573, 1, 0
      %v576 = vsel %vm574, 1, 0
      %vm577 = vcmp.eq.s32.totalorder %v575, 1
      %vm578 = vcmp.eq.s32.totalorder %v576, 1
      %v579 = vsel %vm577, %v572, 0.0
      %v580 = vsel %vm578, %v571, 0.0
      %s581 = scalar_lea.vmem %s4, 16
      %v582 = vld [vmem:[%s581] sm:$0xff]
      %584 = vset.pattern.permute.xlu0 0
      %585 = vperm.xlu0 %584, %v582
      %v586 = vpop.permute.xlu0 %585
      %v588 = vmul.f32 %v579, %v586
      %v589 = vmul.f32 %v580, %v586
      %v590 = vadd.f32 %v564, %v588
      %v591 = vadd.f32 %v565, %v589
      %592 = vrot.lane.b32.xlu0 %v465, 1
      %v593 = vpop.permute.xlu0 %592
      %594 = vrot.lane.b32.xlu0 %v466, 1
      %v595 = vpop.permute.xlu0 %594
      %vm596 = vcmp.lt.s32.totalorder %v468, 1
      %v597 = vsel %vm596, %v593, %v595
      %v598 = vsel %vm596, %v595, %v593
      %v599 = vsel %vm498, 1, 0
      %v600 = vsel %vm499, 1, 0
      %vm601 = vcmp.eq.s32.totalorder %v599, 1
      %vm602 = vcmp.eq.s32.totalorder %v600, 1
      %v603 = vsel %vm601, %v598, 0.0
      %v604 = vsel %vm602, %v597, 0.0
      %s605 = scalar_lea.vmem %s4, 24
      %v606 = vld [vmem:[%s605] sm:$0xff]
      %608 = vset.pattern.permute.xlu0 0
      %609 = vperm.xlu0 %608, %v606
      %v610 = vpop.permute.xlu0 %609
      %v612 = vmul.f32 %v603, %v610
      %v613 = vmul.f32 %v604, %v610
      %v614 = vadd.f32 %v590, %v612
      %v615 = vadd.f32 %v591, %v613
      %616 = vrot.lane.b32.xlu0 %v465, 127
      %v617 = vpop.permute.xlu0 %616
      %618 = vrot.lane.b32.xlu0 %v466, 127
      %v619 = vpop.permute.xlu0 %618
      %vm620 = vcmp.lt.s32.totalorder %v468, 127
      %v621 = vsel %vm620, %v617, %v619
      %v622 = vsel %vm620, %v619, %v617
      %v623 = vsel %vm506, 1, 0
      %v624 = vsel %vm507, 1, 0
      %vm625 = vcmp.eq.s32.totalorder %v623, 1
      %vm626 = vcmp.eq.s32.totalorder %v624, 1
      %v627 = vsel %vm625, %v621, 0.0
      %v628 = vsel %vm626, %v622, 0.0
      %s629 = scalar_lea.vmem %s4, 40
      %v630 = vld [vmem:[%s629] sm:$0xff]
      %632 = vset.pattern.permute.xlu0 0
      %633 = vperm.xlu0 %632, %v630
      %v634 = vpop.permute.xlu0 %633
      %v636 = vmul.f32 %v627, %v634
      %v637 = vmul.f32 %v628, %v634
      %v638 = vadd.f32 %v614, %v636
      %v639 = vadd.f32 %v615, %v637
      %640 = vrot.lane.b32.xlu0 %v465, 113
      %v641 = vpop.permute.xlu0 %640
      %642 = vrot.lane.b32.xlu0 %v466, 113
      %v643 = vpop.permute.xlu0 %642
      %vm644 = vcmp.lt.s32.totalorder %v468, 113
      %v645 = vsel %vm644, %v641, %v643
      %v646 = vsel %vm644, %v643, %v641
      %vm647 = vmand %vm490, %vm498
      %vm648 = vmand %vm491, %vm499
      %v649 = vsel %vm647, 1, 0
      %v650 = vsel %vm648, 1, 0
      %vm651 = vcmp.eq.s32.totalorder %v649, 1
      %vm652 = vcmp.eq.s32.totalorder %v650, 1
      %v653 = vsel %vm651, %v645, 0.0
      %v654 = vsel %vm652, %v646, 0.0
      %s655 = scalar_lea.vmem %s4, 48
      %v656 = vld [vmem:[%s655] sm:$0xff]
      %658 = vset.pattern.permute.xlu0 0
      %659 = vperm.xlu0 %658, %v656
      %v660 = vpop.permute.xlu0 %659
      %v662 = vmul.f32 %v653, %v660
      %v663 = vmul.f32 %v654, %v660
      %v664 = vadd.f32 %v638, %v662
      %v665 = vadd.f32 %v639, %v663
      %666 = vrot.lane.b32.xlu0 %v465, 112
      %v667 = vpop.permute.xlu0 %666
      %668 = vrot.lane.b32.xlu0 %v466, 112
      %v669 = vpop.permute.xlu0 %668
      %vm670 = vcmp.lt.s32.totalorder %v468, 112
      %v671 = vsel %vm670, %v667, %v669
      %v672 = vsel %vm670, %v669, %v667
      %v673 = vsel %vm490, 1, 0
      %v674 = vsel %vm491, 1, 0
      %vm675 = vcmp.eq.s32.totalorder %v673, 1
      %vm676 = vcmp.eq.s32.totalorder %v674, 1
      %v677 = vsel %vm675, %v671, 0.0
      %v678 = vsel %vm676, %v672, 0.0
      %s679 = scalar_lea.vmem %s4, 56
      %v680 = vld [vmem:[%s679] sm:$0xff]
      %682 = vset.pattern.permute.xlu0 0
      %683 = vperm.xlu0 %682, %v680
      %v684 = vpop.permute.xlu0 %683
      %v686 = vmul.f32 %v677, %v684
      %v687 = vmul.f32 %v678, %v684
      %v688 = vadd.f32 %v664, %v686
      %v689 = vadd.f32 %v665, %v687
      %690 = vrot.lane.b32.xlu0 %v465, 111
      %v691 = vpop.permute.xlu0 %690
      %692 = vrot.lane.b32.xlu0 %v466, 111
      %v693 = vpop.permute.xlu0 %692
      %vm694 = vcmp.lt.s32.totalorder %v468, 111
      %v695 = vsel %vm694, %v691, %v693
      %v696 = vsel %vm694, %v693, %v691
      %vm697 = vmand %vm490, %vm506
      %vm698 = vmand %vm491, %vm507
      %v699 = vsel %vm697, 1, 0
      %v700 = vsel %vm698, 1, 0
      %vm701 = vcmp.eq.s32.totalorder %v699, 1
      %vm702 = vcmp.eq.s32.totalorder %v700, 1
      %v703 = vsel %vm701, %v695, 0.0
      %v704 = vsel %vm702, %v696, 0.0
      %s705 = scalar_lea.vmem %s4, 64
      %v706 = vld [vmem:[%s705] sm:$0xff]
      %708 = vset.pattern.permute.xlu0 0
      %709 = vperm.xlu0 %708, %v706
      %v710 = vpop.permute.xlu0 %709
      %v712 = vmul.f32 %v703, %v710
      %v713 = vmul.f32 %v704, %v710
      %v714 = vadd.f32 %v688, %v712
      %v715 = vadd.f32 %v689, %v713
      %v716 = vld [vmem:[%s5] sm:$0xff]
      %718 = vset.pattern.permute.xlu0 0
      %719 = vperm.xlu0 %718, %v716
      %v720 = vpop.permute.xlu0 %719
      %v722 = vadd.f32 %v714, %v720
      %v723 = vadd.f32 %v715, %v720
      %v724 = vld [vmem:[%s6] sm:$0xf]
      %v725 = vld [vmem:[%s7] sm:$0xf]
      %727 = vset.pattern.permute.xlu0 0
      %728 = vperm.xlu0 %727, %v725
      %v729 = vpop.permute.xlu0 %728
      %v732 = vsel %vm309, %v724, 0
      %734 = vmatprep.subr.mxu0 0.0
      %735 = vmatpush1.msra.mxu0 0.0
      %736 = vmatprep.subr.mxu0 0.0
      %737 = vmatpush1.msra.mxu0 0.0
      %738 = vmatprep.subr.mxu0 0.0
      %739 = vmatpush1.msra.mxu0 0.0
      %740 = vmatprep.subr.mxu0 0.0
      %741 = vmatpush1.msra.mxu0 0.0
      %742 = vmatprep.subr.mxu0 0.0
      %743 = vmatpush1.msra.mxu0 0.0
      %744 = vmatprep.subr.mxu0 0.0
      %745 = vmatpush1.msra.mxu0 0.0
      %746 = vmatprep.subr.mxu0 0.0
      %747 = vmatpush1.msra.mxu0 0.0
      %748 = vmatprep.subr.mxu0 0.0
      %749 = vmatpush1.msra.mxu0 0.0
      %750 = vmatprep.subr.mxu0 0.0
      %751 = vmatpush1.msra.mxu0 0.0
      %752 = vmatprep.subr.mxu0 0.0
      %753 = vmatpush1.msra.mxu0 0.0
      %754 = vmatprep.subr.mxu0 0.0
      %755 = vmatpush1.msra.mxu0 0.0
      %756 = vmatprep.subr.mxu0 0.0
      %757 = vmatpush1.msra.mxu0 0.0
      %758 = vmatprep.subr.mxu0 0.0
      %759 = vmatpush1.msra.mxu0 0.0
      %760 = vmatprep.subr.mxu0 0.0
      %761 = vmatpush1.msra.mxu0 0.0
      %762 = vmatprep.subr.mxu0 0.0
      %763 = vmatpush1.msra.mxu0 0.0
      %764 = vmatprep.subr.mxu0 %v723
      %765 = vmatpush1.msra.mxu0 %v722
      %766 = vmatprep.subr.mxu0 0.0
      %767 = vmatpush2.msra.mxu0 0.0
      %768 = vmatprep.subr.mxu0 0.0
      %769 = vmatpush2.msra.mxu0 0.0
      %770 = vmatprep.subr.mxu0 0.0
      %771 = vmatpush2.msra.mxu0 0.0
      %772 = vmatprep.subr.mxu0 0.0
      %773 = vmatpush2.msra.mxu0 0.0
      %774 = vmatprep.subr.mxu0 0.0
      %775 = vmatpush2.msra.mxu0 0.0
      %776 = vmatprep.subr.mxu0 0.0
      %777 = vmatpush2.msra.mxu0 0.0
      %778 = vmatprep.subr.mxu0 0.0
      %779 = vmatpush2.msra.mxu0 0.0
      %780 = vmatprep.subr.mxu0 0.0
      %781 = vmatpush2.msra.mxu0 0.0
      %782 = vmatprep.subr.mxu0 0.0
      %783 = vmatpush2.msra.mxu0 0.0
      %784 = vmatprep.subr.mxu0 0.0
      %785 = vmatpush2.msra.mxu0 0.0
      %786 = vmatprep.subr.mxu0 0.0
      %787 = vmatpush2.msra.mxu0 0.0
      %788 = vmatprep.subr.mxu0 0.0
      %789 = vmatpush2.msra.mxu0 0.0
      %790 = vmatprep.subr.mxu0 0.0
      %791 = vmatpush2.msra.mxu0 0.0
      %792 = vmatprep.subr.mxu0 0.0
      %793 = vmatpush2.msra.mxu0 0.0
      %794 = vmatprep.subr.mxu0 0.0
      %795 = vmatpush2.msra.mxu0 0.0
      %796 = vmatprep.subr.mxu0 0.0
      %797 = vmatpush2.msra.mxu0 0.0
      %798 = vmatprep.mubr.f32.mxu0 0.0
      %799 = vmatmul.mubr.f32.gmra.mxu0 %v732
      %v800 = vpop.f32.mrf.mxu0
      %v801 = vadd.f32 %v729, %v800
      %v802 = vpop.f32.mrf.mxu0
      %v803 = vadd.f32 %v729, %v802
      %804 = vdwg.mxu0
      %v805 = vmax.f32 %v801, 0.0
      %v806 = vmax.f32 %v803, 0.0
      %v809 = vrot.slane %v805, 4
      %v810 = vrot.slane %v806, 4
      %vm813 = vcmask 1043456
      %v814 = vsel %vm813, %v380, %v809
      %v815 = vsel %vm813, %v382, %v810
      %816 = vst [vmem:[%s305] sm:$0xff] %v814
      %817 = vst [vmem:[%s305 + $0x8] sm:$0xff] %v815
      %p818 = scmp.lt.s32.totalorder %s19, 1
      %s819 = scalar_select %p818, %s19, 1
      %s820 = smul.addr %s819, 2
      %s821 = smul.addr %s820, 8
      %s822 = scalar_lea.vmem %s8, %s821
      // Predicated region
      $region53: #{shufflenet_block_forward.1} parent=51 // pred_check
        %p823 = pneg %p210
      $region54: #{shufflenet_block_forward.1} parent=51 // pred_check_branch
        %825 = sbr.rel (%p823) target = $region56
      $region55: #{shufflenet_block_forward.1} parent=51 // pred_region
        _
      $region56: #{shufflenet_block_forward.1} parent=51 // pred_fallthru
        _
    $region52: #{shufflenet_block_forward.1} parent=5 // pred_fallthru
      _
    %p826 = scmp.le.s32.totalorder 2, %s14
    // Predicated region
    $region57: #{shufflenet_block_forward.1} parent=5 // pred_check
      %p827 = pneg %p826
    $region58: #{shufflenet_block_forward.1} parent=5 // pred_check_branch
      %829 = sbr.rel (%p827) target = $region60
    $region59: #{shufflenet_block_forward.1} parent=5 // pred_region
      %s830 = ssub.s32 %s14, 2
      // Predicated region
      $region61: #{shufflenet_block_forward.1} parent=59 // pred_check
        %p831 = pneg %p216
      $region62: #{shufflenet_block_forward.1} parent=59 // pred_check_branch
        %833 = sbr.rel (%p831) target = $region64
      $region63: #{shufflenet_block_forward.1} parent=59 // pred_region
        %p834 = scmp.lt.s32.totalorder %s20, 1
        %s835 = scalar_select %p834, %s20, 1
        %s836 = smul.addr %s835, 2
        %s837 = smul.addr %s836, 8
        %s838 = scalar_lea.vmem %s8, %s837
      $region64: #{shufflenet_block_forward.1} parent=59 // pred_fallthru
        _
    $region60: #{shufflenet_block_forward.1} parent=5 // pred_fallthru
      _
  $region6: #{shufflenet_block_forward.1} parent=0 // loop_footer
    %s18 = sadd.s32 1, %s14
  $region7: #{shufflenet_block_forward.1} parent=0 // loop_footer_branch
    %13 = sbr.rel target = $region3
  $region8: #{shufflenet_block_forward.1} parent=0 // loop_exit
    _

</llo_original>
